<compile_context>
chip_gen: v7x
topology: tpu7x:2x2x1
jax: 0.10.0
libtpu: 0.0.40
codegen_flags: <defaults>
</compile_context>

<pallas_src>
import jax
import jax.numpy as jnp
from jax.experimental import pallas as pl
from jax.experimental.pallas import tpu as pltpu

EPS = 1e-5
LANE = 128
_VMEM_BUDGET = 36 << 20      # target live-buffer footprint per pallas_call
_VMEM_LIMIT_CAP = 48 << 20   # stays well under v7x's 64 MiB physical VMEM


def _round_up(x, m):
    return (x + m - 1) // m * m


def _pad2(a, rows, cols):
    return jnp.pad(a, ((0, rows - a.shape[0]), (0, cols - a.shape[1])))


def _pick_batch_tile_and_vmem(batch, dims_pad, mm_bytes, sub, max_tile):
    """Derive the batch-tile size and VMEM limit from the padded footprint."""
    d_max = max(dims_pad)
    w_max = max(a * b for a, b in zip(dims_pad[:-1], dims_pad[1:]))

    def need(t):
        return (2 * w_max * mm_bytes         # largest weight (assume double-buffered)
                + 2 * t * d_max * mm_bytes   # input activation tile, double-buffered
                + 2 * t * d_max * 4          # output tile (f32 worst case), double-buffered
                + (2 << 20))                 # bias / stats / gamma-beta / headroom

    tb = max(sub, min(_round_up(max_tile, sub), _round_up(batch, sub)))
    while tb > sub and need(tb) > _VMEM_BUDGET:
        tb = max(sub, _round_up(tb // 2, sub))
    b_pad = _round_up(batch, tb)
    vmem_limit = int(min(max(need(tb), 24 << 20), _VMEM_LIMIT_CAP))
    return tb, b_pad, vmem_limit


def _make_layer_kernel(*, bn_in, stats_out, relu, inv_b, batch, tile_b,
                       mask_rows, stats_via_mxu, mm_dtype):
    """(BN-apply of previous layer ->) Linear (-> ReLU -> batch-stat emit)."""

    def kernel(*refs):
        idx = 0
        a_ref = refs[idx]; idx += 1
        if bn_in:
            stats_ref = refs[idx]
            gb_ref = refs[idx + 1]
            idx += 2
        w_ref = refs[idx]
        bias_ref = refs[idx + 1]
        idx += 2
        out_ref = refs[idx]; idx += 1
        ostats_ref = refs[idx] if stats_out else None

        x = a_ref[...]
        if bn_in:
            # Finalize the previous layer's full-batch stats (sum / sum-of-sq,
            # f32) into a folded scale/shift and apply.  var = E[h^2] - mean^2,
            # clamped at 0 to guard against cancellation going negative.
            s = stats_ref[...]                                  # (2, Din) f32
            mean = s[0:1, :] * inv_b
            var = jnp.maximum(s[1:2, :] * inv_b - mean * mean, 0.0)
            scale = gb_ref[0:1, :] * jax.lax.rsqrt(var + EPS)   # gamma * rsqrt
            shift = gb_ref[1:2, :] - mean * scale               # beta - mean*scale
            x = (x.astype(mm_dtype) * scale.astype(mm_dtype)
                 + shift.astype(mm_dtype))
        x = x.astype(mm_dtype)

        # MXU matmul in the (possibly bf16) matmul dtype, f32 accumulation.
        h = jnp.dot(x, w_ref[...], preferred_element_type=jnp.float32)
        h = h + bias_ref[...]
        if relu:
            h = jnp.maximum(h, 0.0)
        out_ref[...] = h.astype(out_ref.dtype)

        if stats_out:
            i = pl.program_id(0)
            if stats_via_mxu:
                # Batch reduction on the otherwise-idle MXU: (1,TB) @ (TB,D).
                if mask_rows:
                    lanes = jax.lax.broadcasted_iota(jnp.int32, (1, tile_b), 1)
                    row = (i * tile_b + lanes < batch).astype(mm_dtype)
                else:
                    row = jnp.ones((1, tile_b), mm_dtype)
                hm = h.astype(mm_dtype)   # matches what is staged to HBM
                psum = jnp.dot(row, hm, preferred_element_type=jnp.float32)
                psq = jnp.dot(row, hm * hm, preferred_element_type=jnp.float32)
            else:
                # Exact f32 sums for the strict float32 path.
                if mask_rows:
                    rows = jax.lax.broadcasted_iota(jnp.int32, (tile_b, 1), 0)
                    m = (i * tile_b + rows < batch).astype(jnp.float32)
                    hm = h * m
                else:
                    hm = h
                psum = jnp.sum(hm, axis=0, keepdims=True)
                psq = jnp.sum(hm * h, axis=0, keepdims=True)
            part = jnp.concatenate([psum, psq], axis=0)         # (2, Dout) f32

            @pl.when(i == 0)
            def _():
                ostats_ref[...] = jnp.zeros_like(ostats_ref)

            ostats_ref[...] += part

    return kernel


def _layer_call(a, stats, gb, w, bias, *, tb, relu, stats_out, out_dtype,
                vmem_limit, inv_b, batch, mask_rows, stats_via_mxu, mm_dtype):
    b_pad, d_in = a.shape
    d_out = w.shape[1]
    bn_in = stats is not None
    grid = (b_pad // tb,)

    kernel = _make_layer_kernel(
        bn_in=bn_in, stats_out=stats_out, relu=relu, inv_b=inv_b, batch=batch,
        tile_b=tb, mask_rows=mask_rows, stats_via_mxu=stats_via_mxu,
        mm_dtype=mm_dtype)

    in_arrays = [a]
    in_specs = [pl.BlockSpec((tb, d_in), lambda i: (i, 0))]           # batch-tiled
    if bn_in:
        in_arrays += [stats, gb]
        in_specs += [pl.BlockSpec((2, d_in), lambda i: (0, 0)),       # resident
                     pl.BlockSpec((2, d_in), lambda i: (0, 0))]       # resident
    in_arrays += [w, bias]
    in_specs += [pl.BlockSpec((d_in, d_out), lambda i: (0, 0)),       # resident
                 pl.BlockSpec((1, d_out), lambda i: (0, 0))]          # resident

    out_shape = [jax.ShapeDtypeStruct((b_pad, d_out), out_dtype)]
    out_specs = [pl.BlockSpec((tb, d_out), lambda i: (i, 0))]
    if stats_out:
        out_shape.append(jax.ShapeDtypeStruct((2, d_out), jnp.float32))
        out_specs.append(pl.BlockSpec((2, d_out), lambda i: (0, 0)))  # accumulator

    # The stats output revisits the same block across the batch axis, so that
    # axis must be "arbitrary"; the final (stats-free) stage is "parallel" so
    # it can be megacore-sharded on v7x.
    semantics = ("arbitrary",) if stats_out else ("parallel",)

    res = pl.pallas_call(
        kernel,
        grid=grid,
        out_shape=tuple(out_shape),
        in_specs=in_specs,
        out_specs=tuple(out_specs),
        compiler_params=pltpu.CompilerParams(
            dimension_semantics=semantics,
            vmem_limit_bytes=vmem_limit),
    )(*in_arrays)

    return res if stats_out else res[0]


def mlp_forward(x, params, output_dim, *, matmul_dtype=jnp.bfloat16,
                max_batch_tile=512):
    """params: flat list [W0, b0, g0, be0, (Wi, bi, gi, bei)*, Wo, bo]."""
    n_blocks = (len(params) - 6) // 4
    batch, d_in = x.shape

    mm_dtype = jnp.dtype(matmul_dtype)
    mm_bytes = mm_dtype.itemsize
    sub = 16 if mm_dtype == jnp.dtype(jnp.bfloat16) else 8   # packed-sublane dense

    layer_params = [params[4 * i: 4 * i + 4] for i in range(n_blocks + 1)]
    w_out, b_out = params[-2:]

    dims = [d_in] + [w.shape[1] for (w, _, _, _) in layer_params] + [output_dim]
    dims_pad = [_round_up(d, LANE) for d in dims]

    tb, b_pad, vmem_limit = _pick_batch_tile_and_vmem(
        batch, dims_pad, mm_bytes, sub, max_batch_tile)

    common = dict(tb=tb, vmem_limit=vmem_limit, inv_b=1.0 / batch, batch=batch,
                  mask_rows=(b_pad != batch),
                  stats_via_mxu=(mm_dtype != jnp.dtype(jnp.float32)),
                  mm_dtype=mm_dtype)

    # Lane-dense zero padding keeps the math identical: padded feature columns
    # stay exactly zero through linear+relu+BN (gamma/beta padded with zeros),
    # and padded batch rows are excluded from the BN statistics.
    a = _pad2(x, b_pad, dims_pad[0]).astype(mm_dtype)
    stats = None
    gb_prev = None

    for li, (w, b, g, be) in enumerate(layer_params):
        din_p, dout_p = dims_pad[li], dims_pad[li + 1]
        w_p = _pad2(w, din_p, dout_p).astype(mm_dtype)
        b_p = _pad2(b, 1, dout_p)
        a, stats = _layer_call(a, stats, gb_prev, w_p, b_p,
                               relu=True, stats_out=True, out_dtype=mm_dtype,
                               **common)
        gb_prev = _pad2(jnp.concatenate([g, be], axis=0), 2, dout_p)

    # Output layer: BN-apply of the last hidden block, then Linear (no ReLU).
    din_p, dout_p = dims_pad[-2], dims_pad[-1]
    w_p = _pad2(w_out, din_p, dout_p).astype(mm_dtype)
    b_p = _pad2(b_out, 1, dout_p)
    out = _layer_call(a, stats, gb_prev, w_p, b_p,
                      relu=False, stats_out=False, out_dtype=jnp.float32,
                      **common)

    return out[:batch, :output_dim]


def init_params(key, input_dim, hidden_units, output_dim):
    """Deterministic parameter init (shapes match the PyTorch module)."""
    params = []
    dims = [input_dim] + list(hidden_units)

    def linear(key, d_in, d_out):
        kw, kb = jax.random.split(key)
        bound = 1.0 / jnp.sqrt(d_in)
        w = jax.random.uniform(kw, (d_in, d_out), jnp.float32, -bound, bound)
        b = jax.random.uniform(kb, (1, d_out), jnp.float32, -bound, bound)
        return w, b

    keys = jax.random.split(key, len(dims))

    # input_layer + batch_norm1
    w, b = linear(keys[0], dims[0], dims[1])
    params += [w, b,
               jnp.ones((1, dims[1]), jnp.float32),
               jnp.zeros((1, dims[1]), jnp.float32)]

    # hidden blocks
    for i in range(1, len(hidden_units)):
        w, b = linear(keys[i], dims[i], dims[i + 1])
        params += [w, b,
                   jnp.ones((1, dims[i + 1]), jnp.float32),
                   jnp.zeros((1, dims[i + 1]), jnp.float32)]

    # output layer
    kout = jax.random.fold_in(key, 1234)
    w, b = linear(kout, hidden_units[-1], output_dim)
    params += [w, b]
    return params


def _bn_ref(h, g, be):
    mean = jnp.mean(h, axis=0, keepdims=True)
    var = jnp.mean((h - mean) ** 2, axis=0, keepdims=True)
    return g * (h - mean) * jax.lax.rsqrt(var + EPS) + be


def reference_forward(x, params):
    """Pure-JAX reference mirroring the PyTorch forward (training BN, no dropout)."""
    n_blocks = (len(params) - 6) // 4
    idx = 0
    w0, b0, g0, be0 = params[idx:idx + 4]
    idx += 4
    h = jnp.maximum(x @ w0 + b0, 0.0)
    h = _bn_ref(h, g0, be0)
    for _ in range(n_blocks):
        wi, bi, gi, bei = params[idx:idx + 4]
        idx += 4
        h = jnp.maximum(h @ wi + bi, 0.0)
        h = _bn_ref(h, gi, bei)
    wo, bo = params[idx:idx + 2]
    return h @ wo + bo


if __name__ == "__main__":
    key = jax.random.PRNGKey(0)

    # --- Case 1: small shapes from the spec; batch deliberately not a multiple
    # of 8/16 so the pad-row masking path is exercised. ---
    kx, kp = jax.random.split(key)
    batch, input_dim, hidden_units, output_dim = 6, 16, [32, 32, 32], 4
    x = jax.random.normal(kx, (batch, input_dim), jnp.float32)
    params = init_params(kp, input_dim, hidden_units, output_dim)
    ref = reference_forward(x, params)

    # Default path: bf16 matmul operands / staged activations, f32 accumulation.
    out_bf16 = jax.block_until_ready(mlp_forward(x, params, output_dim))
    assert out_bf16.shape == (batch, output_dim)
    assert jnp.allclose(out_bf16, ref, atol=1.5e-1, rtol=1.5e-1), "bf16 mismatch vs reference"

    # Strict float32 path (exact f32 batch-statistic sums).
    out_f32 = jax.block_until_ready(
        mlp_forward(x, params, output_dim, matmul_dtype=jnp.float32))
    assert out_f32.shape == (batch, output_dim)
    assert jnp.allclose(out_f32, ref, atol=1e-3, rtol=1e-3), "f32 mismatch vs reference"

    # --- Case 2: multi-tile batch grid (forced small tile) exercising
    # cross-tile stat accumulation, pad-row masking and MXU reductions. ---
    kx2, kp2 = jax.random.split(jax.random.fold_in(key, 7))
    batch2, input_dim2, hidden_units2, output_dim2 = 200, 20, [64, 48], 3
    x2 = jax.random.normal(kx2, (batch2, input_dim2), jnp.float32)
    params2 = init_params(kp2, input_dim2, hidden_units2, output_dim2)
    ref2 = reference_forward(x2, params2)

    out2_bf16 = jax.block_until_ready(
        mlp_forward(x2, params2, output_dim2, max_batch_tile=64))
    assert out2_bf16.shape == (batch2, output_dim2)
    assert jnp.allclose(out2_bf16, ref2, atol=1.5e-1, rtol=1.5e-1), "tiled bf16 mismatch"

    out2_f32 = jax.block_until_ready(
        mlp_forward(x2, params2, output_dim2, matmul_dtype=jnp.float32,
                    max_batch_tile=64))
    assert jnp.allclose(out2_f32, ref2, atol=1e-3, rtol=1e-3), "tiled f32 mismatch"

    print("KERNEL_OK")
</pallas_src>

<mosaic_0001>
module attributes {stable_mosaic.version = 11 : i64} {
  func.func @kernel(%arg0: i32, %arg1: memref<16x128xbf16, #tpu.memory_space<vmem>>, %arg2: memref<128x128xbf16, #tpu.memory_space<vmem>>, %arg3: memref<1x128xf32, #tpu.memory_space<vmem>>, %arg4: memref<16x128xbf16, #tpu.memory_space<vmem>>, %arg5: memref<2x128xf32, #tpu.memory_space<vmem>>) attributes {dimension_semantics = [#tpu.dimension_semantics<arbitrary>], iteration_bounds = array<i64: 1>, scalar_prefetch = 0 : i64, scratch_operands = 0 : i64, tpu.core_type = #tpu.core_type<tc>, window_params = [{transform_indices = @transform_0, window_bounds = array<i64: 16, 128>}, {pipeline_mode = #tpu.pipeline_mode<synchronous>, transform_indices = @transform_1, window_bounds = array<i64: 128, 128>}, {pipeline_mode = #tpu.pipeline_mode<synchronous>, transform_indices = @transform_2, window_bounds = array<i64: 1, 128>}, {transform_indices = @transform_3, window_bounds = array<i64: 16, 128>}, {pipeline_mode = #tpu.pipeline_mode<synchronous>, transform_indices = @transform_4, window_bounds = array<i64: 2, 128>}]} {
    %c0 = arith.constant 0 : index
    %c0_0 = arith.constant 0 : index
    %0 = vector.load %arg1[%c0, %c0_0] : memref<16x128xbf16, #tpu.memory_space<vmem>>, vector<16x128xbf16>
    %c0_1 = arith.constant 0 : index
    %c0_2 = arith.constant 0 : index
    %1 = vector.load %arg2[%c0_1, %c0_2] : memref<128x128xbf16, #tpu.memory_space<vmem>>, vector<128x128xbf16>
    %cst = arith.constant dense<0.000000e+00> : vector<16x128xf32>
    %2 = tpu.matmul %0, %1, %cst {dimension_numbers = #tpu.dot_dimension_numbers<[1], [0], [0], [1], [0, 0, 1, 1], [], []>} : vector<16x128xbf16>, vector<128x128xbf16>, vector<16x128xf32> -> vector<16x128xf32>
    %c0_3 = arith.constant 0 : index
    %c0_4 = arith.constant 0 : index
    %3 = vector.load %arg3[%c0_3, %c0_4] : memref<1x128xf32, #tpu.memory_space<vmem>>, vector<1x128xf32>
    %4 = vector.broadcast %3 : vector<1x128xf32> to vector<16x128xf32>
    %5 = arith.addf %2, %4 : vector<16x128xf32>
    %cst_5 = arith.constant 0.000000e+00 : f32
    %6 = vector.broadcast %cst_5 : f32 to vector<16x128xf32>
    %7 = arith.maximumf %5, %6 : vector<16x128xf32>
    %8 = arith.truncf %7 : vector<16x128xf32> to vector<16x128xbf16>
    %c0_6 = arith.constant 0 : index
    %c0_7 = arith.constant 0 : index
    %9 = vector.load %arg4[%c0_6, %c0_7] : memref<16x128xbf16, #tpu.memory_space<vmem>>, vector<16x128xbf16>
    tpu.vector_store %arg4[%c0_6, %c0_7], %8 {strides = array<i32>} : memref<16x128xbf16, #tpu.memory_space<vmem>>, vector<16x128xbf16>,
    %10 = tpu.iota {dimensions = array<i32: 1>} : vector<1x16xi32>
    %c16_i32 = arith.constant 16 : i32
    %11 = arith.muli %arg0, %c16_i32 : i32
    %12 = vector.broadcast %11 : i32 to vector<1x16xi32>
    %13 = arith.addi %12, %10 : vector<1x16xi32>
    %c6_i32 = arith.constant 6 : i32
    %14 = vector.broadcast %c6_i32 : i32 to vector<1x16xi32>
    %15 = arith.cmpi slt, %13, %14 : vector<1x16xi32>
    %16 = arith.extui %15 : vector<1x16xi1> to vector<1x16xi32>
    %17 = arith.sitofp %16 : vector<1x16xi32> to vector<1x16xf32>
    %18 = arith.truncf %17 : vector<1x16xf32> to vector<1x16xbf16>
    %19 = arith.truncf %7 : vector<16x128xf32> to vector<16x128xbf16>
    %cst_8 = arith.constant dense<0.000000e+00> : vector<1x128xf32>
    %20 = tpu.matmul %18, %19, %cst_8 {dimension_numbers = #tpu.dot_dimension_numbers<[1], [0], [0], [1], [0, 0, 1, 1], [], []>} : vector<1x16xbf16>, vector<16x128xbf16>, vector<1x128xf32> -> vector<1x128xf32>
    %21 = arith.mulf %19, %19 : vector<16x128xbf16>
    %cst_9 = arith.constant dense<0.000000e+00> : vector<1x128xf32>
    %22 = tpu.matmul %18, %21, %cst_9 {dimension_numbers = #tpu.dot_dimension_numbers<[1], [0], [0], [1], [0, 0, 1, 1], [], []>} : vector<1x16xbf16>, vector<16x128xbf16>, vector<1x128xf32> -> vector<1x128xf32>
    %23 = tpu.concatenate %20, %22 in 0 : vector<1x128xf32>, vector<1x128xf32> -> vector<2x128xf32>
    %c0_i32 = arith.constant 0 : i32
    %24 = arith.cmpi eq, %arg0, %c0_i32 : i32
    %25 = arith.extui %24 : i1 to i32
    %c0_i32_10 = arith.constant 0 : i32
    %26 = arith.cmpi ne, %25, %c0_i32_10 : i32
    scf.if %26 {
      %cst_15 = arith.constant 0.000000e+00 : f32
      %30 = vector.broadcast %cst_15 : f32 to vector<2x128xf32>
      %c0_16 = arith.constant 0 : index
      %c0_17 = arith.constant 0 : index
      %31 = vector.load %arg5[%c0_16, %c0_17] : memref<2x128xf32, #tpu.memory_space<vmem>>, vector<2x128xf32>
      tpu.vector_store %arg5[%c0_16, %c0_17], %30 {strides = array<i32>} : memref<2x128xf32, #tpu.memory_space<vmem>>, vector<2x128xf32>,
    } else {
    }
    %c0_11 = arith.constant 0 : index
    %c0_12 = arith.constant 0 : index
    %27 = vector.load %arg5[%c0_11, %c0_12] : memref<2x128xf32, #tpu.memory_space<vmem>>, vector<2x128xf32>
    %28 = arith.addf %27, %23 : vector<2x128xf32>
    %c0_13 = arith.constant 0 : index
    %c0_14 = arith.constant 0 : index
    %29 = vector.load %arg5[%c0_13, %c0_14] : memref<2x128xf32, #tpu.memory_space<vmem>>, vector<2x128xf32>
    tpu.vector_store %arg5[%c0_13, %c0_14], %28 {strides = array<i32>} : memref<2x128xf32, #tpu.memory_space<vmem>>, vector<2x128xf32>,
    return
  }
  func.func @transform_0(%arg0: i32) -> (i32, i32) {
    %c0_i32 = arith.constant 0 : i32
    %c0_i32_0 = arith.constant 0 : i32
    return %arg0, %c0_i32 : i32, i32
  }
  func.func @transform_1(%arg0: i32) -> (i32, i32) {
    %c0_i32 = arith.constant 0 : i32
    %c0_i32_0 = arith.constant 0 : i32
    %c0_i32_1 = arith.constant 0 : i32
    return %c0_i32, %c0_i32_0 : i32, i32
  }
  func.func @transform_2(%arg0: i32) -> (i32, i32) {
    %c0_i32 = arith.constant 0 : i32
    %c0_i32_0 = arith.constant 0 : i32
    %c0_i32_1 = arith.constant 0 : i32
    return %c0_i32, %c0_i32_0 : i32, i32
  }
  func.func @transform_3(%arg0: i32) -> (i32, i32) {
    %c0_i32 = arith.constant 0 : i32
    %c0_i32_0 = arith.constant 0 : i32
    return %arg0, %c0_i32 : i32, i32
  }
  func.func @transform_4(%arg0: i32) -> (i32, i32) {
    %c0_i32 = arith.constant 0 : i32
    %c0_i32_0 = arith.constant 0 : i32
    %c0_i32_1 = arith.constant 0 : i32
    return %c0_i32, %c0_i32_0 : i32, i32
  }
}

</mosaic_0001>

<llo_original>
// kernel: tpu_custom_call.1
$region0: #{tpu_custom_call.1}
  #allocation0 [shape = 'u32[]', space=smem, size = 0x4, offset = 0x4, fixed_abs, tag = 'smem constant byte address 0x4 - core index']
  #allocation1 [shape = 'u32[144,128]{1,0:T(1,128)}', space=vmem, size = 0x12000, scoped, tag = 'internal scratch']
  %s0 = inlined_call_operand.hbm [shape: bf16[16,128], index: 0, kind: input, shape index: {}]
  %s1 = inlined_call_operand.hbm [shape: bf16[128,128], index: 1, kind: input, shape index: {}]
  %s2 = inlined_call_operand.vmem [shape: f32[1,128], index: 2, kind: input, shape index: {}]
  %s3 = inlined_call_operand.hbm [shape: bf16[16,128], index: 3, kind: output, shape index: {0}]
  %s4 = inlined_call_operand.hbm [shape: f32[2,128], index: 4, kind: output, shape index: {1}]
  %5 = xla_tuple %s3, %s4
  %s6 = sld [smem:[#allocation0]]
  $region42: #{tpu_custom_call.1} parent=0
    _
  %s8 = ssub.s32 1, %s6
  %s9 = scalar_select 0, %s8, %s6
  $region1: #{tpu_custom_call.1} parent=0
    #allocation2 [shape = 'u8[4096]{0}', space=vmem, size = 0x1000, scoped, tag = 'input window, operand 0, single buffered']
    #allocation3 [shape = 's32[1]{0}', space=sflag, size = 0x4, scoped, tag = 'scoped memory for tpu_custom_call.1']
    #allocation4 [shape = 's32[1]{0}', space=sflag, size = 0x4, scoped, tag = 'scoped memory for tpu_custom_call.1']
    #allocation5 [shape = 'u8[32768]{0}', space=vmem, size = 0x8000, scoped, tag = 'input window, operand 1, single buffered']
    #allocation6 [shape = 's32[1]{0}', space=sflag, size = 0x4, scoped, tag = 'scoped memory for tpu_custom_call.1']
    #allocation7 [shape = 'u8[4096]{0}', space=vmem, size = 0x1000, scoped, tag = 'output window, operand 0, single buffered']
    #allocation8 [shape = 'u8[1024]{0}', space=vmem, size = 0x400, scoped, tag = 'output window, operand 1, single buffered']
    #allocation9 [shape = 's32[1]{0}', space=sflag, size = 0x4, scoped, tag = 'scoped memory for tpu_custom_call.1']
    %10 = vsyncpa [#allocation3], 0
    %11 = vsyncpa [#allocation6], 0
    %12 = vsyncpa [#allocation4], 0
    %13 = vsyncpa [#allocation9], 0
    // Predicated region
    $region2: #{tpu_custom_call.1} parent=1 // pred_check
      _
    $region3: #{tpu_custom_call.1} parent=1 // pred_check_branch
      %15 = sbr.rel (0) target = $region5
    $region4: #{tpu_custom_call.1} parent=1 // pred_region
      %s17 = ssub.s32 128, 128
      %18 = vsyncadd [#allocation3], %s17
      %s19 = sshll.u32 [#allocation2], 4
      %s20 = int_to_ptr.vmem [resolvable:$true] %s19
      %25 = dma.hbm_to_vmem [thread:$0]  %s0, 128, %s20, [#allocation3], 64, 64, 4
    $region5: #{tpu_custom_call.1} parent=1 // pred_fallthru
      _
    // Predicated region
    $region6: #{tpu_custom_call.1} parent=1 // pred_check
      _
    $region7: #{tpu_custom_call.1} parent=1 // pred_check_branch
      %27 = sbr.rel (0) target = $region9
    $region8: #{tpu_custom_call.1} parent=1 // pred_region
      %s29 = ssub.s32 1024, 1024
      %30 = vsyncadd [#allocation6], %s29
      %s31 = sshll.u32 [#allocation5], 4
      %s32 = int_to_ptr.vmem [resolvable:$true] %s31
      %37 = dma.hbm_to_vmem [thread:$0]  %s1, 1024, %s32, [#allocation6], 64, 64, 4
    $region9: #{tpu_custom_call.1} parent=1 // pred_fallthru
      _
    // Predicated region
    $region10: #{tpu_custom_call.1} parent=1 // pred_check
      _
    $region11: #{tpu_custom_call.1} parent=1 // pred_check_branch
      %39 = sbr.rel (0) target = $region13
    $region12: #{tpu_custom_call.1} parent=1 // pred_region
      _
    $region13: #{tpu_custom_call.1} parent=1 // pred_fallthru
      _
    // Predicated region
    $region14: #{tpu_custom_call.1} parent=1 // pred_check
      _
    $region15: #{tpu_custom_call.1} parent=1 // pred_check_branch
      %41 = sbr.rel (0) target = $region17
    $region16: #{tpu_custom_call.1} parent=1 // pred_region
      %42 = dma.done [#allocation3], 128
    $region17: #{tpu_custom_call.1} parent=1 // pred_fallthru
      _
    // Predicated region
    $region18: #{tpu_custom_call.1} parent=1 // pred_check
      _
    $region19: #{tpu_custom_call.1} parent=1 // pred_check_branch
      %44 = sbr.rel (0) target = $region21
    $region20: #{tpu_custom_call.1} parent=1 // pred_region
      %45 = dma.done [#allocation6], 1024
    $region21: #{tpu_custom_call.1} parent=1 // pred_fallthru
      _
    %v47 = vld [vmem:[#allocation2] sm:$0xf]
    %v48 = vld [vmem:[#allocation2 + $0x4] sm:$0xf]
    %v49 = vld [vmem:[#allocation5] sm:$0xf]
    %v50 = vld [vmem:[#allocation5 + $0x4] sm:$0xf]
    %v51 = vld [vmem:[#allocation5 + $0x8] sm:$0xf]
    %v52 = vld [vmem:[#allocation5 + $0xc] sm:$0xf]
    %v53 = vld [vmem:[#allocation5 + $0x10] sm:$0xf]
    %v54 = vld [vmem:[#allocation5 + $0x14] sm:$0xf]
    %v55 = vld [vmem:[#allocation5 + $0x18] sm:$0xf]
    %v56 = vld [vmem:[#allocation5 + $0x1c] sm:$0xf]
    %v57 = vld [vmem:[#allocation5 + $0x20] sm:$0xf]
    %v58 = vld [vmem:[#allocation5 + $0x24] sm:$0xf]
    %v59 = vld [vmem:[#allocation5 + $0x28] sm:$0xf]
    %v60 = vld [vmem:[#allocation5 + $0x2c] sm:$0xf]
    %v61 = vld [vmem:[#allocation5 + $0x30] sm:$0xf]
    %v62 = vld [vmem:[#allocation5 + $0x34] sm:$0xf]
    %v63 = vld [vmem:[#allocation5 + $0x38] sm:$0xf]
    %v64 = vld [vmem:[#allocation5 + $0x3c] sm:$0xf]
    %v65 = vld [vmem:[%s2] sm:$0x1]
    %v67 = vlaneseq
    %v68 = vshrl.u32 %v67, 7
    %v69 = vsub.s32 0, %v68
    %v70 = vrot.slane %v65, %v69
    %v74 = vunpack.c.l.b16 %v47
    %v75 = vunpack.c.l.b16 %v48
    %v76 = vpack.c.b16 %v75, %v74
    %v94 = vunpack.c.l.b16 %v49
    %v95 = vunpack.c.l.b16 %v50
    %v96 = vunpack.c.l.b16 %v51
    %v97 = vunpack.c.l.b16 %v52
    %v98 = vunpack.c.l.b16 %v53
    %v99 = vunpack.c.l.b16 %v54
    %v100 = vunpack.c.l.b16 %v55
    %v101 = vunpack.c.l.b16 %v56
    %v102 = vunpack.c.l.b16 %v57
    %v103 = vunpack.c.l.b16 %v58
    %v104 = vunpack.c.l.b16 %v59
    %v105 = vunpack.c.l.b16 %v60
    %v106 = vunpack.c.l.b16 %v61
    %v107 = vunpack.c.l.b16 %v62
    %v108 = vunpack.c.l.b16 %v63
    %v109 = vunpack.c.l.b16 %v64
    %v110 = vpack.c.b16 %v95, %v94
    %v111 = vpack.c.b16 %v97, %v96
    %v112 = vpack.c.b16 %v99, %v98
    %v113 = vpack.c.b16 %v101, %v100
    %v114 = vpack.c.b16 %v103, %v102
    %v115 = vpack.c.b16 %v105, %v104
    %v116 = vpack.c.b16 %v107, %v106
    %v117 = vpack.c.b16 %v109, %v108
    %126 = vmatprep.subr.bf16.mxu0 0
    %127 = vmatpush1.bf16.msra.mxu0 %v110
    %128 = vmatprep.subr.bf16.mxu0 0
    %129 = vmatpush1.bf16.msra.mxu0 %v111
    %130 = vmatprep.subr.bf16.mxu0 0
    %131 = vmatpush1.bf16.msra.mxu0 %v112
    %132 = vmatprep.subr.bf16.mxu0 0
    %133 = vmatpush1.bf16.msra.mxu0 %v113
    %134 = vmatprep.subr.bf16.mxu0 0
    %135 = vmatpush1.bf16.msra.mxu0 %v114
    %136 = vmatprep.subr.bf16.mxu0 0
    %137 = vmatpush1.bf16.msra.mxu0 %v115
    %138 = vmatprep.subr.bf16.mxu0 0
    %139 = vmatpush1.bf16.msra.mxu0 %v116
    %140 = vmatprep.subr.bf16.mxu0 0
    %141 = vmatpush1.bf16.msra.mxu0 %v117
    %142 = vmatprep.subr.bf16.mxu0 0
    %143 = vmatpush1.bf16.msra.mxu0 0
    %144 = vmatprep.subr.bf16.mxu0 0
    %145 = vmatpush1.bf16.msra.mxu0 0
    %146 = vmatprep.subr.bf16.mxu0 0
    %147 = vmatpush1.bf16.msra.mxu0 0
    %148 = vmatprep.subr.bf16.mxu0 0
    %149 = vmatpush1.bf16.msra.mxu0 0
    %150 = vmatprep.subr.bf16.mxu0 0
    %151 = vmatpush1.bf16.msra.mxu0 0
    %152 = vmatprep.subr.bf16.mxu0 0
    %153 = vmatpush1.bf16.msra.mxu0 0
    %154 = vmatprep.subr.bf16.mxu0 0
    %155 = vmatpush1.bf16.msra.mxu0 0
    %156 = vmatprep.subr.bf16.mxu0 0
    %157 = vmatpush1.bf16.msra.mxu0 0
    %158 = vmatprep.mubr.bf16.mxu0 0
    %159 = vmatmul.mubr.bf16.gmra.mrb[0].mxu0 %v76
    %v160 = vpop.f32.mrb[0].mxu0
    %v161 = vadd.f32 %v70, %v160
    %v162 = vpop.f32.mrb[0].mxu0
    %v163 = vpop.f32.mrb[0].mxu0
    %v164 = vadd.f32 %v70, %v163
    %v165 = vpop.f32.mrb[0].mxu0
    %166 = vdwg.mxu0
    %v167 = vmax.f32 %v161, 0.0
    %v168 = vmax.f32 %v164, 0.0
    %v169 = vpack.c.bf16 %v168, %v167
    %v171 = vunpack.c.l.b16 %v169
    %v172 = vunpack.c.h.b16 %v169
    %v173 = vpack.c.b16 %v171, %v171
    %v174 = vpack.c.b16 %v172, %v172
    %177 = vst [vmem:[#allocation7] sm:$0xf] %v173
    %178 = vst [vmem:[#allocation7 + $0x4] sm:$0xf] %v174
    %v179 = vlaneseq
    %v180 = vand.u32 %v179, 127
    %s181 = smul.u32 0, 16
    %v182 = vstv %s181
    %v183 = vadd.s32 %v182, %v180
    %vm184 = vcmp.lt.s32.totalorder %v183, 6
    %v185 = vsel %vm184, 1, 0
    %v186 = vcvt.s32.f32 %v185
    %v187 = vpack.c.bf16 %v186, %v186
    %vm188 = vcmask 130048
    %v190 = vsel %vm188, %v187, 0
    %192 = vmatprep.subr.bf16.mxu0 0
    %193 = vmatpush1.bf16.msra.mxu0 %v169
    %194 = vmatprep.subr.bf16.mxu0 0
    %195 = vmatpush1.bf16.msra.mxu0 0
    %196 = vmatprep.subr.bf16.mxu0 0
    %197 = vmatpush1.bf16.msra.mxu0 0
    %198 = vmatprep.subr.bf16.mxu0 0
    %199 = vmatpush1.bf16.msra.mxu0 0
    %200 = vmatprep.subr.bf16.mxu0 0
    %201 = vmatpush1.bf16.msra.mxu0 0
    %202 = vmatprep.subr.bf16.mxu0 0
    %203 = vmatpush1.bf16.msra.mxu0 0
    %204 = vmatprep.subr.bf16.mxu0 0
    %205 = vmatpush1.bf16.msra.mxu0 0
    %206 = vmatprep.subr.bf16.mxu0 0
    %207 = vmatpush1.bf16.msra.mxu0 0
    %208 = vmatprep.subr.bf16.mxu0 0
    %209 = vmatpush1.bf16.msra.mxu0 0
    %210 = vmatprep.subr.bf16.mxu0 0
    %211 = vmatpush1.bf16.msra.mxu0 0
    %212 = vmatprep.subr.bf16.mxu0 0
    %213 = vmatpush1.bf16.msra.mxu0 0
    %214 = vmatprep.subr.bf16.mxu0 0
    %215 = vmatpush1.bf16.msra.mxu0 0
    %216 = vmatprep.subr.bf16.mxu0 0
    %217 = vmatpush1.bf16.msra.mxu0 0
    %218 = vmatprep.subr.bf16.mxu0 0
    %219 = vmatpush1.bf16.msra.mxu0 0
    %220 = vmatprep.subr.bf16.mxu0 0
    %221 = vmatpush1.bf16.msra.mxu0 0
    %222 = vmatprep.subr.bf16.mxu0 0
    %223 = vmatpush1.bf16.msra.mxu0 0
    %224 = vmatprep.mubr.bf16.mxu0 0
    %225 = vmatmul.mubr.bf16.gmra.mrb[0].mxu0 %v190
    %v226 = vpop.f32.mrb[0].mxu0
    %v227 = vadd.f32 0.0, %v226
    %v228 = vpop.f32.mrb[0].mxu0
    %v229 = vpop.f32.mrb[0].mxu0
    %v230 = vpop.f32.mrb[0].mxu0
    %231 = vdwg.mxu0
    %v232 = vmul.bf16 %v169, %v169
    %233 = vmatprep.subr.bf16.mxu0 0
    %234 = vmatpush1.bf16.msra.mxu0 %v232
    %235 = vmatprep.subr.bf16.mxu0 0
    %236 = vmatpush1.bf16.msra.mxu0 0
    %237 = vmatprep.subr.bf16.mxu0 0
    %238 = vmatpush1.bf16.msra.mxu0 0
    %239 = vmatprep.subr.bf16.mxu0 0
    %240 = vmatpush1.bf16.msra.mxu0 0
    %241 = vmatprep.subr.bf16.mxu0 0
    %242 = vmatpush1.bf16.msra.mxu0 0
    %243 = vmatprep.subr.bf16.mxu0 0
    %244 = vmatpush1.bf16.msra.mxu0 0
    %245 = vmatprep.subr.bf16.mxu0 0
    %246 = vmatpush1.bf16.msra.mxu0 0
    %247 = vmatprep.subr.bf16.mxu0 0
    %248 = vmatpush1.bf16.msra.mxu0 0
    %249 = vmatprep.subr.bf16.mxu0 0
    %250 = vmatpush1.bf16.msra.mxu0 0
    %251 = vmatprep.subr.bf16.mxu0 0
    %252 = vmatpush1.bf16.msra.mxu0 0
    %253 = vmatprep.subr.bf16.mxu0 0
    %254 = vmatpush1.bf16.msra.mxu0 0
    %255 = vmatprep.subr.bf16.mxu0 0
    %256 = vmatpush1.bf16.msra.mxu0 0
    %257 = vmatprep.subr.bf16.mxu0 0
    %258 = vmatpush1.bf16.msra.mxu0 0
    %259 = vmatprep.subr.bf16.mxu0 0
    %260 = vmatpush1.bf16.msra.mxu0 0
    %261 = vmatprep.subr.bf16.mxu0 0
    %262 = vmatpush1.bf16.msra.mxu0 0
    %263 = vmatprep.subr.bf16.mxu0 0
    %264 = vmatpush1.bf16.msra.mxu0 0
    %265 = vmatprep.mubr.bf16.mxu0 0
    %266 = vmatmul.mubr.bf16.gmra.mrb[0].mxu0 %v190
    %v267 = vpop.f32.mrb[0].mxu0
    %v268 = vadd.f32 0.0, %v267
    %v269 = vpop.f32.mrb[0].mxu0
    %v270 = vpop.f32.mrb[0].mxu0
    %v271 = vpop.f32.mrb[0].mxu0
    %272 = vdwg.mxu0
    %v274 = vrot.slane %v268, 7
    %vm276 = vcmask 1040384
    %v277 = vsel %vm276, %v227, %v274
    %p278 = scmp.eq.s32.totalorder 0, 0
    // Predicated region
    $region22: #{tpu_custom_call.1} parent=1 // pred_check
      %p279 = pneg %p278
    $region23: #{tpu_custom_call.1} parent=1 // pred_check_branch
      %281 = sbr.rel (%p279) target = $region25
    $region24: #{tpu_custom_call.1} parent=1 // pred_region
      %282 = vst [vmem:[#allocation8] sm:$0x3] 0.0
    $region25: #{tpu_custom_call.1} parent=1 // pred_fallthru
      _
    %v283 = vld [vmem:[#allocation8] sm:$0x3]
    %v284 = vadd.f32 %v283, %v277
    %285 = vst [vmem:[#allocation8] sm:$0x3] %v284
    // Predicated region
    $region26: #{tpu_custom_call.1} parent=1 // pred_check
      _
    $region27: #{tpu_custom_call.1} parent=1 // pred_check_branch
      %287 = sbr.rel (0) target = $region29
    $region28: #{tpu_custom_call.1} parent=1 // pred_region
      %s289 = ssub.s32 128, 128
      %290 = vsyncadd [#allocation4], %s289
      %s291 = sshll.u32 [#allocation7], 4
      %s292 = int_to_ptr.vmem [resolvable:$true] %s291
      %297 = dma.vmem_to_hbm [thread:$0]  %s292, 128, %s3, [#allocation4], 64, 64, 4
    $region29: #{tpu_custom_call.1} parent=1 // pred_fallthru
      _
    // Predicated region
    $region30: #{tpu_custom_call.1} parent=1 // pred_check
      _
    $region31: #{tpu_custom_call.1} parent=1 // pred_check_branch
      %299 = sbr.rel (0) target = $region33
    $region32: #{tpu_custom_call.1} parent=1 // pred_region
      %s301 = ssub.s32 32, 32
      %302 = vsyncadd [#allocation9], %s301
      %s304 = sshll.u32 [#allocation8], 4
      %s305 = int_to_ptr.vmem [resolvable:$true] %s304
      %307 = dma.vmem_to_hbm [thread:$0]  %s305, 32, %s4, [#allocation9]
    $region33: #{tpu_custom_call.1} parent=1 // pred_fallthru
      _
    // Predicated region
    $region34: #{tpu_custom_call.1} parent=1 // pred_check
      _
    $region35: #{tpu_custom_call.1} parent=1 // pred_check_branch
      %309 = sbr.rel (0) target = $region37
    $region36: #{tpu_custom_call.1} parent=1 // pred_region
      %310 = dma.done [#allocation4], 128
    $region37: #{tpu_custom_call.1} parent=1 // pred_fallthru
      _
    // Predicated region
    $region38: #{tpu_custom_call.1} parent=1 // pred_check
      _
    $region39: #{tpu_custom_call.1} parent=1 // pred_check_branch
      %312 = sbr.rel (0) target = $region41
    $region40: #{tpu_custom_call.1} parent=1 // pred_region
      %313 = dma.done [#allocation9], 32
    $region41: #{tpu_custom_call.1} parent=1 // pred_fallthru
      _
    %314 = vsyncpa [#allocation3], 1
    %315 = vsyncpa [#allocation6], 1
    %316 = vsyncpa [#allocation4], 1
    %317 = vsyncpa [#allocation9], 1

</llo_original>
